<compile_context>
chip_gen: v7x
topology: tpu7x:2x2x1
jax: 0.10.0
libtpu: 0.0.40
codegen_flags: <defaults>
</compile_context>

<pallas_src>
import functools

import jax
import jax.numpy as jnp
from jax.experimental import pallas as pl
from jax.experimental.pallas import tpu as pltpu

# Lane-dense widths tried for the main (non-ragged) path, widest first.
_WIDTHS = (1024, 512, 256, 128)
# Per-block byte budget: measured roofline shows 1-4 MiB tiles hit ~85%+ of HBM
# BW vs 29-63% for 256-512 KiB tiles.  Double-buffered in+out => ~16 MiB VMEM.
_TARGET_BLOCK_BYTES = 4 << 20
# Ragged fallback uses (1, W) blocks; the single valid sublane is padded 8x in
# VMEM tiling, so keep its data budget smaller (512 KiB data -> ~4 MiB VMEM).
_RAGGED_BLOCK_ELEMS = 128 * 1024

_MIB = 1 << 20


@functools.lru_cache(maxsize=None)
def _has_native_bf16_valu() -> bool:
    """v6e / v7x VPUs have bf16 VALUs; v5e and older need the f32 upcast."""
    try:
        kind = jax.devices()[0].device_kind.lower()
    except Exception:  # conservative default: always-correct f32 path
        return False
    return ("v6" in kind) or ("v7" in kind)


def _make_kernel(compute_dtype):
    def _kernel(x_ref, o_ref):
        x = x_ref[...].astype(compute_dtype)
        # (x - 0.5) / 0.5 == 2*x - 1 : one VPU FMA; python scalars stay weakly
        # typed so bf16 inputs stay bf16 when compute_dtype is bf16.
        o_ref[...] = (x * 2.0 - 1.0).astype(o_ref.dtype)
    return _kernel


def _compiler_params(footprint_bytes):
    return pltpu.CompilerParams(
        dimension_semantics=("parallel",),  # shard tiles across v7x's 2 TensorCores
        vmem_limit_bytes=int(min(64 * _MIB, max(32 * _MIB, footprint_bytes + 4 * _MIB))),
    )


def _cost(n, in_itemsize, out_itemsize):
    return pl.CostEstimate(flops=2 * n, transcendentals=0,
                           bytes_accessed=n * (in_itemsize + out_itemsize))


def _normalize_slab(slab, out_dtype, compute_dtype):
    """Main path: element count divides a lane-dense width (multiple of 128)."""
    rows, width = slab.shape
    in_item = jnp.dtype(slab.dtype).itemsize
    out_item = jnp.dtype(out_dtype).itemsize
    item = max(in_item, out_item)
    # Rows per block from the byte budget, rounded down to a sublane multiple.
    budget_rows = max(8, (_TARGET_BLOCK_BYTES // (width * item)) // 8 * 8)
    if rows <= budget_rows:
        block_rows, grid = rows, (1,)
    else:
        block_rows, grid = budget_rows, (pl.cdiv(rows, budget_rows),)
    footprint = 2 * block_rows * width * (in_item + out_item)  # dbl-buffered in+out
    return pl.pallas_call(
        _make_kernel(compute_dtype),
        out_shape=jax.ShapeDtypeStruct((rows, width), out_dtype),
        grid_spec=pl.GridSpec(
            grid=grid,
            in_specs=[pl.BlockSpec((block_rows, width), lambda i: (i, 0))],
            out_specs=pl.BlockSpec((block_rows, width), lambda i: (i, 0)),
        ),
        compiler_params=_compiler_params(footprint),
        cost_estimate=_cost(rows * width, in_item, out_item),
    )(slab)


def _normalize_ragged(flat, out_dtype, compute_dtype):
    """Element count not a multiple of 128: one pass over the unpadded data.

    Pallas masks the partial final block, so there is no wrapper-side pad/slice
    (which previously added two full HBM passes).
    TODO(synk): the single-sublane (1, W) layout wastes 7/8 of each VMEM tile;
    a masked (rows, 128) tail handler would tighten this rarely-hit path further.
    """
    n = flat.shape[0]
    slab = flat.reshape(1, n)
    in_item = jnp.dtype(flat.dtype).itemsize
    out_item = jnp.dtype(out_dtype).itemsize
    if n <= 128:
        block_cols, grid = n, (1,)
    else:
        block_cols = min(_RAGGED_BLOCK_ELEMS, (n // 128) * 128)
        grid = (pl.cdiv(n, block_cols),)
    footprint = 2 * 8 * block_cols * (in_item + out_item)  # sublane-padded to 8 rows
    out = pl.pallas_call(
        _make_kernel(compute_dtype),
        out_shape=jax.ShapeDtypeStruct((1, n), out_dtype),
        grid_spec=pl.GridSpec(
            grid=grid,
            in_specs=[pl.BlockSpec((1, block_cols), lambda j: (0, j))],
            out_specs=pl.BlockSpec((1, block_cols), lambda j: (0, j)),
        ),
        compiler_params=_compiler_params(footprint),
        cost_estimate=_cost(n, in_item, out_item),
    )(slab)
    return out.reshape(n)


@jax.jit
def normalize_layer(x: jax.Array) -> jax.Array:
    """Pallas implementation of NormalizeLayer.forward: (x - 0.5) / 0.5."""
    orig_shape = x.shape
    # Match PyTorch type promotion: float dtypes pass through, ints promote to f32.
    # TODO(synk): integer inputs are normalized on raw values (no /255 rescale),
    # mirroring the PyTorch module's literal arithmetic.
    out_dtype = x.dtype if jnp.issubdtype(x.dtype, jnp.floating) else jnp.float32

    # Native math for f32; native bf16 only on chips with bf16 VALUs (v6e/v7x);
    # everything else upcasts to f32 in-register (free vs. HBM traffic).
    if x.dtype == jnp.float32:
        compute_dtype = jnp.float32
    elif x.dtype == jnp.bfloat16 and _has_native_bf16_valu():
        compute_dtype = jnp.bfloat16
    else:
        compute_dtype = jnp.float32

    n = x.size
    if n == 0:
        return jnp.zeros(orig_shape, out_dtype)

    width = next((w for w in _WIDTHS if n % w == 0), None)
    if width is not None:
        # Metadata-only reshape into a lane-dense [rows, width] slab (no HBM pass).
        out = _normalize_slab(x.reshape(n // width, width), out_dtype, compute_dtype)
    else:
        out = _normalize_ragged(x.reshape(-1), out_dtype, compute_dtype)
    return out.reshape(orig_shape)


if __name__ == "__main__":
    key = jax.random.PRNGKey(0)
    k1, k2 = jax.random.split(key)

    # Small NCHW image batch (typical use of NormalizeLayer).
    x = jax.random.uniform(k1, (2, 4, 16, 16), dtype=jnp.float32)
    y = jax.block_until_ready(normalize_layer(x))
    y_ref = (x - 0.5) / 0.5
    assert y.shape == x.shape and y.dtype == x.dtype
    assert jnp.allclose(y, y_ref, atol=1e-6, rtol=1e-6)

    # bf16 stays bf16 end-to-end through HBM (cast / native math only in vregs).
    xb = x.astype(jnp.bfloat16)
    yb = jax.block_until_ready(normalize_layer(xb))
    yb_ref = ((xb.astype(jnp.float32) - 0.5) / 0.5).astype(jnp.bfloat16)
    assert yb.dtype == jnp.bfloat16 and yb.shape == xb.shape
    assert jnp.allclose(yb.astype(jnp.float32), yb_ref.astype(jnp.float32),
                        atol=2e-2, rtol=2e-2)

    # Ragged element count (not a multiple of 128) exercises the masked-tail path.
    xr = jax.random.uniform(k2, (1, 3, 15, 15), dtype=jnp.float32)
    yr = jax.block_until_ready(normalize_layer(xr))
    yr_ref = (xr - 0.5) / 0.5
    assert yr.shape == xr.shape and yr.dtype == xr.dtype
    assert jnp.allclose(yr, yr_ref, atol=1e-6, rtol=1e-6)

    print("KERNEL_OK")
</pallas_src>

<mosaic_0001>
module attributes {stable_mosaic.version = 11 : i64} {
  func.func @_kernel(%arg0: i32, %arg1: memref<2x1024xf32, #tpu.memory_space<vmem>>, %arg2: memref<2x1024xf32, #tpu.memory_space<vmem>>) attributes {dimension_semantics = [#tpu.dimension_semantics<parallel>], iteration_bounds = array<i64: 1>, scalar_prefetch = 0 : i64, scratch_operands = 0 : i64, tpu.core_type = #tpu.core_type<tc>, window_params = [{transform_indices = @transform_0, window_bounds = array<i64: 2, 1024>}, {transform_indices = @transform_1, window_bounds = array<i64: 2, 1024>}]} {
    %c0 = arith.constant 0 : index
    %c0_0 = arith.constant 0 : index
    %0 = vector.load %arg1[%c0, %c0_0] : memref<2x1024xf32, #tpu.memory_space<vmem>>, vector<2x1024xf32>
    %cst = arith.constant 2.000000e+00 : f32
    %1 = vector.broadcast %cst : f32 to vector<2x1024xf32>
    %2 = arith.mulf %0, %1 : vector<2x1024xf32>
    %cst_1 = arith.constant 1.000000e+00 : f32
    %3 = vector.broadcast %cst_1 : f32 to vector<2x1024xf32>
    %4 = arith.subf %2, %3 : vector<2x1024xf32>
    %c0_2 = arith.constant 0 : index
    %c0_3 = arith.constant 0 : index
    %5 = vector.load %arg2[%c0_2, %c0_3] : memref<2x1024xf32, #tpu.memory_space<vmem>>, vector<2x1024xf32>
    tpu.vector_store %arg2[%c0_2, %c0_3], %4 {strides = array<i32>} : memref<2x1024xf32, #tpu.memory_space<vmem>>, vector<2x1024xf32>,
    return
  }
  func.func @transform_0(%arg0: i32) -> (i32, i32) {
    %c0_i32 = arith.constant 0 : i32
    %c0_i32_0 = arith.constant 0 : i32
    return %arg0, %c0_i32 : i32, i32
  }
  func.func @transform_1(%arg0: i32) -> (i32, i32) {
    %c0_i32 = arith.constant 0 : i32
    %c0_i32_0 = arith.constant 0 : i32
    return %arg0, %c0_i32 : i32, i32
  }
}

</mosaic_0001>

<llo_original>
// kernel: normalize_layer.1
$region0: #{normalize_layer.1}
  #allocation0 [shape = 'u32[]', space=smem, size = 0x4, offset = 0x4, fixed_abs, tag = 'smem constant byte address 0x4 - core index']
  #allocation1 [shape = 'u32[144,128]{1,0:T(1,128)}', space=vmem, size = 0x12000, scoped, tag = 'internal scratch']
  %s0 = inlined_call_operand.vmem [shape: f32[2,1024], index: 0, kind: input, shape index: {}]
  %s1 = inlined_call_operand.vmem [shape: f32[2,1024], index: 1, kind: output, shape index: {}]
  %s2 = sld [smem:[#allocation0]]
  $region14: #{normalize_layer.1} parent=0
    _
  %s4 = ssub.s32 1, %s2
  %s5 = scalar_select 0, %s4, %s2
  // Predicated region
  $region2: #{normalize_layer.1} parent=0 // pred_check
    _
  $region3: #{normalize_layer.1} parent=0 // pred_check_branch
    %7 = sbr.rel (0) target = $region5
  $region4: #{normalize_layer.1} parent=0 // pred_region
    _
  $region5: #{normalize_layer.1} parent=0 // pred_fallthru
    _
  %v8 = vld [vmem:[%s0] sm:$0xff]
  %v9 = vld [vmem:[%s0 + $0x8] sm:$0xff]
  %v10 = vmul.f32 %v8, 2.0
  %v11 = vmul.f32 %v9, 2.0
  %v12 = vsub.f32 %v10, 1.0
  %v13 = vsub.f32 %v11, 1.0
  %14 = vst [vmem:[%s1] sm:$0xff] %v12
  %15 = vst [vmem:[%s1 + $0x8] sm:$0xff] %v13
  // Predicated region
  $region6: #{normalize_layer.1} parent=0 // pred_check
    _
  $region7: #{normalize_layer.1} parent=0 // pred_check_branch
    %17 = sbr.rel (0) target = $region9
  $region8: #{normalize_layer.1} parent=0 // pred_region
    _
  $region9: #{normalize_layer.1} parent=0 // pred_fallthru
    _
  // Predicated region
  $region10: #{normalize_layer.1} parent=0 // pred_check
    _
  $region11: #{normalize_layer.1} parent=0 // pred_check_branch
    %19 = sbr.rel (0) target = $region13
  $region12: #{normalize_layer.1} parent=0 // pred_region
    _
  $region13: #{normalize_layer.1} parent=0 // pred_fallthru
    _

</llo_original>
